<compile_context>
chip_gen: v7x
topology: tpu7x:2x2x1
jax: 0.10.0
libtpu: 0.0.40
codegen_flags: <defaults>
</compile_context>

<pallas_src>
import functools

import jax
import jax.numpy as jnp
from jax.experimental import pallas as pl
from jax.experimental.pallas import tpu as pltpu

ALPHA = 0.25
GAMMA = 2.0            # statically 2 -> implemented as pt * pt (no pow)
_W0 = 1.0 - ALPHA      # alpha*t + (1-alpha)*(1-t) == _W0 + _W1*t   (exact)
_W1 = 2.0 * ALPHA - 1.0


def _focal_loss_kernel(pred_ref, targ_ref, loss_ref, cnt_ref, *, acc_rows):
    @pl.when((pl.program_id(0) == 0) & (pl.program_id(1) == 0))
    def _init():
        loss_ref[...] = jnp.zeros_like(loss_ref)
        cnt_ref[...] = jnp.zeros_like(cnt_ref)

    x = pred_ref[...].astype(jnp.float32)          # (tile_r, tile_c)
    t = targ_ref[...].astype(jnp.float32)
    tile_r, tile_c = x.shape

    # One exp shared between sigmoid and the numerically stable BCE-with-logits.
    # NOTE: pl.reciprocal(approx=True) could move the divide to the EUP, but the
    # exact divide is kept to preserve the 1e-4 comparison tolerance.
    e = jnp.exp(-jnp.abs(x))                               # EUP
    inv = 1.0 / (1.0 + e)
    s = jnp.where(x >= 0.0, inv, e * inv)                  # sigmoid(x)
    bce = jnp.maximum(x, 0.0) - x * t + jnp.log1p(e)       # EUP (log1p)

    st = s * t
    pt = (s + t) - (st + st)                               # (1-s)*t + s*(1-t)
    w = (_W0 + _W1 * t) * (pt * pt)                        # focal weight (pre-mask)

    # mask == (conf_targets > 0); select (not multiply) so stray NaN/Inf in
    # masked-out lanes can never leak into the sums.
    keep = t > 0.0
    loss = jnp.where(keep, bce * w, 0.0)
    cnt = jnp.where(keep, 1.0, 0.0)

    # Reduce tile_r -> acc_rows with plain vreg adds (sublane-group reshape is
    # layout-free) and accumulate into the resident accumulators.
    groups = tile_r // acc_rows
    loss_ref[...] += loss.reshape(groups, acc_rows, tile_c).sum(axis=0)
    cnt_ref[...] += cnt.reshape(groups, acc_rows, tile_c).sum(axis=0)


def _divisor_tile(n, unit, budget):
    """Largest multiple of `unit` that divides `n` and is <= `budget` (0 if none)."""
    if unit <= 0 or budget < unit or n % unit:
        return 0
    m = n // unit
    for d in range(min(m, budget // unit), 0, -1):
        if m % d == 0:
            return d * unit
    return 0


def _pick_tiles(B, A, block_elems, sub_unit):
    """Pick (tile_r, tile_c) that exactly divide (B, A) -> no ragged blocks."""
    if B * A <= block_elems:
        return B, A                                    # single block
    # 1) Row tiling with full-width rows (contiguous DMA; works for any A).
    tr = _divisor_tile(B, sub_unit, block_elems // max(A, 1))
    if tr:
        return tr, A
    # 2) Column tiling with full-height columns (needs a 128-aligned tile).
    tc = _divisor_tile(A, 128, block_elems // max(B, 1))
    if tc:
        return B, tc
    # 3) Tile both dims.
    tc = _divisor_tile(A, 128, max(128, block_elems // sub_unit))
    if tc:
        tr = _divisor_tile(B, sub_unit, max(sub_unit, block_elems // tc))
        if tr:
            return tr, tc
    # 4) Fallback: one block covering the whole array.
    # TODO(synk): pathological shapes (huge prime dims with B*A*4 >> VMEM) would
    # need ragged-tail masking; not implemented.
    return B, A


def focal_loss_fcos(conf_preds, conf_targets, *, block_elems=512 * 1024):
    """conf_preds: [B, A] logits; conf_targets: [B, A] labels. Returns shape [1]."""
    B, A = conf_preds.shape
    assert conf_targets.shape == (B, A), (conf_preds.shape, conf_targets.shape)

    # Sub-32-bit dtypes pack along sublanes -> row-tile unit grows accordingly.
    packs = [max(1, 4 // jnp.dtype(a.dtype).itemsize)
             for a in (conf_preds, conf_targets)]
    sub_unit = 8 * max(packs)

    tile_r, tile_c = _pick_tiles(B, A, block_elems, sub_unit)
    nr, nc = B // tile_r, A // tile_c
    acc_rows = 8 if tile_r % 8 == 0 else tile_r

    kernel = functools.partial(_focal_loss_kernel, acc_rows=acc_rows)

    loss_acc, cnt_acc = pl.pallas_call(
        kernel,
        out_shape=(
            jax.ShapeDtypeStruct((acc_rows, tile_c), jnp.float32),
            jax.ShapeDtypeStruct((acc_rows, tile_c), jnp.float32),
        ),
        grid_spec=pltpu.PrefetchScalarGridSpec(
            num_scalar_prefetch=0,
            grid=(nr, nc),
            in_specs=[
                pl.BlockSpec((tile_r, tile_c), lambda i, j: (i, j)),
                pl.BlockSpec((tile_r, tile_c), lambda i, j: (i, j)),
            ],
            out_specs=(
                pl.BlockSpec((acc_rows, tile_c), lambda i, j: (0, 0)),
                pl.BlockSpec((acc_rows, tile_c), lambda i, j: (0, 0)),
            ),
        ),
        compiler_params=pltpu.CompilerParams(
            # Accumulators are revisited across both grid axes -> "arbitrary".
            dimension_semantics=("arbitrary", "arbitrary"),
            vmem_limit_bytes=32 * 1024 * 1024),
    )(conf_preds, conf_targets)

    loss_sum = jnp.sum(loss_acc)
    num_pos = jnp.sum(cnt_acc)
    # Matches the PyTorch module exactly: divides by num_pos with no zero guard
    # (num_pos == 0 gives NaN/Inf there too).
    return (loss_sum / num_pos)[None]


def _reference_focal_loss(pred, target):
    """Pure-JAX reference of the PyTorch module, for sanity checking."""
    pred = pred.astype(jnp.float32)
    t = target.astype(jnp.float32)
    s = jax.nn.sigmoid(pred)
    pt = (1 - s) * t + s * (1 - t)
    mask = (t > 0).astype(jnp.float32)
    w = (ALPHA * t + (1 - ALPHA) * (1 - t)) * mask * pt ** GAMMA
    bce = jnp.maximum(pred, 0.0) - pred * t + jnp.log1p(jnp.exp(-jnp.abs(pred)))
    num_pos = jnp.sum(mask)
    return (jnp.sum(bce * w) / num_pos)[None]


if __name__ == "__main__":
    key = jax.random.PRNGKey(0)
    ks = jax.random.split(key, 12)

    def check(preds, targs, **kw):
        out = jax.block_until_ready(focal_loss_fcos(preds, targs, **kw))
        ref = _reference_focal_loss(preds, targs)
        assert out.shape == (1,), out.shape
        assert jnp.allclose(out, ref, rtol=1e-4, atol=1e-5), (out, ref)

    # 1) Canonical small shape (batch=2, anchors=256, num_classes=1 squeezed):
    #    single-block path.
    p = jax.random.normal(ks[0], (2, 256), dtype=jnp.float32)
    t = jax.random.bernoulli(ks[1], 0.3, (2, 256)).astype(jnp.float32)
    t = t.at[0, 0].set(1.0)                     # guarantee num_pos > 0
    check(p, t)

    # 2) Non-lane-aligned anchor count (A % 128 != 0): full-extent last-dim block.
    p = jax.random.normal(ks[2], (3, 1000), dtype=jnp.float32)
    t = jax.random.bernoulli(ks[3], 0.2, (3, 1000)).astype(jnp.float32)
    t = t.at[0, 0].set(1.0)
    check(p, t)

    # 3) Row-tiled path: small block budget forces a (16, 1000) block, 4-step grid.
    p = jax.random.normal(ks[4], (64, 1000), dtype=jnp.float32)
    t = jax.random.bernoulli(ks[5], 0.2, (64, 1000)).astype(jnp.float32)
    t = t.at[0, 0].set(1.0)
    check(p, t, block_elems=16 * 1000)

    # 4) Column-tiled path with tile_r == B == 2 (not a multiple of 8).
    p = jax.random.normal(ks[6], (2, 1024), dtype=jnp.float32)
    t = jax.random.bernoulli(ks[7], 0.2, (2, 1024)).astype(jnp.float32)
    t = t.at[0, 0].set(1.0)
    check(p, t, block_elems=512)

    # 5) Both dims tiled: (8, 128) blocks on a 2x2 grid.
    p = jax.random.normal(ks[8], (16, 256), dtype=jnp.float32)
    t = jax.random.bernoulli(ks[9], 0.2, (16, 256)).astype(jnp.float32)
    t = t.at[0, 0].set(1.0)
    check(p, t, block_elems=8 * 128)

    # 6) bf16 logits / bf16 targets pass straight through (no wrapper upcast).
    p = jax.random.normal(ks[10], (2, 384), dtype=jnp.bfloat16)
    t = jax.random.bernoulli(ks[11], 0.3, (2, 384)).astype(jnp.bfloat16)
    t = t.at[0, 0].set(1.0)
    check(p, t)

    print("KERNEL_OK")
</pallas_src>

<mosaic_0001>
module attributes {stable_mosaic.version = 11 : i64} {
  func.func @_focal_loss_kernel(%arg0: i32, %arg1: i32, %arg2: memref<2x256xf32, #tpu.memory_space<vmem>>, %arg3: memref<2x256xf32, #tpu.memory_space<vmem>>, %arg4: memref<2x256xf32, #tpu.memory_space<vmem>>, %arg5: memref<2x256xf32, #tpu.memory_space<vmem>>) attributes {dimension_semantics = [#tpu.dimension_semantics<arbitrary>, #tpu.dimension_semantics<arbitrary>], iteration_bounds = array<i64: 1, 1>, scalar_prefetch = 0 : i64, scratch_operands = 0 : i64, tpu.core_type = #tpu.core_type<tc>, window_params = [{transform_indices = @transform_0, window_bounds = array<i64: 2, 256>}, {transform_indices = @transform_1, window_bounds = array<i64: 2, 256>}, {pipeline_mode = #tpu.pipeline_mode<synchronous>, transform_indices = @transform_2, window_bounds = array<i64: 2, 256>}, {pipeline_mode = #tpu.pipeline_mode<synchronous>, transform_indices = @transform_3, window_bounds = array<i64: 2, 256>}]} {
    %c0_i32 = arith.constant 0 : i32
    %0 = arith.cmpi eq, %arg0, %c0_i32 : i32
    %c0_i32_0 = arith.constant 0 : i32
    %1 = arith.cmpi eq, %arg1, %c0_i32_0 : i32
    %2 = arith.andi %0, %1 : i1
    %3 = arith.extui %2 : i1 to i32
    %c0_i32_1 = arith.constant 0 : i32
    %4 = arith.cmpi ne, %3, %c0_i32_1 : i32
    scf.if %4 {
      %cst_25 = arith.constant 0.000000e+00 : f32
      %53 = vector.broadcast %cst_25 : f32 to vector<2x256xf32>
      %c0_26 = arith.constant 0 : index
      %c0_27 = arith.constant 0 : index
      %54 = vector.load %arg4[%c0_26, %c0_27] : memref<2x256xf32, #tpu.memory_space<vmem>>, vector<2x256xf32>
      tpu.vector_store %arg4[%c0_26, %c0_27], %53 {strides = array<i32>} : memref<2x256xf32, #tpu.memory_space<vmem>>, vector<2x256xf32>,
      %cst_28 = arith.constant 0.000000e+00 : f32
      %55 = vector.broadcast %cst_28 : f32 to vector<2x256xf32>
      %c0_29 = arith.constant 0 : index
      %c0_30 = arith.constant 0 : index
      %56 = vector.load %arg5[%c0_29, %c0_30] : memref<2x256xf32, #tpu.memory_space<vmem>>, vector<2x256xf32>
      tpu.vector_store %arg5[%c0_29, %c0_30], %55 {strides = array<i32>} : memref<2x256xf32, #tpu.memory_space<vmem>>, vector<2x256xf32>,
    } else {
    }
    %c0 = arith.constant 0 : index
    %c0_2 = arith.constant 0 : index
    %5 = vector.load %arg2[%c0, %c0_2] : memref<2x256xf32, #tpu.memory_space<vmem>>, vector<2x256xf32>
    %c0_3 = arith.constant 0 : index
    %c0_4 = arith.constant 0 : index
    %6 = vector.load %arg3[%c0_3, %c0_4] : memref<2x256xf32, #tpu.memory_space<vmem>>, vector<2x256xf32>
    %7 = math.absf %5 : vector<2x256xf32>
    %cst = arith.constant 0.000000e+00 : f32
    %8 = vector.broadcast %cst : f32 to vector<2x256xf32>
    %9 = arith.subf %8, %7 : vector<2x256xf32>
    %10 = math.exp %9 : vector<2x256xf32>
    %cst_5 = arith.constant 1.000000e+00 : f32
    %11 = vector.broadcast %cst_5 : f32 to vector<2x256xf32>
    %12 = arith.addf %11, %10 : vector<2x256xf32>
    %cst_6 = arith.constant 1.000000e+00 : f32
    %13 = vector.broadcast %cst_6 : f32 to vector<2x256xf32>
    %14 = arith.divf %13, %12 : vector<2x256xf32>
    %cst_7 = arith.constant 0.000000e+00 : f32
    %15 = vector.broadcast %cst_7 : f32 to vector<2x256xf32>
    %16 = arith.cmpf oge, %5, %15 : vector<2x256xf32>
    %17 = arith.mulf %10, %14 : vector<2x256xf32>
    %18 = arith.select %16, %14, %17 : vector<2x256xi1>, vector<2x256xf32>
    %cst_8 = arith.constant 0.000000e+00 : f32
    %19 = vector.broadcast %cst_8 : f32 to vector<2x256xf32>
    %20 = arith.maximumf %5, %19 : vector<2x256xf32>
    %21 = arith.mulf %5, %6 : vector<2x256xf32>
    %22 = arith.subf %20, %21 : vector<2x256xf32>
    %23 = math.log1p %10 : vector<2x256xf32>
    %24 = arith.addf %22, %23 : vector<2x256xf32>
    %25 = arith.mulf %18, %6 : vector<2x256xf32>
    %26 = arith.addf %18, %6 : vector<2x256xf32>
    %27 = arith.addf %25, %25 : vector<2x256xf32>
    %28 = arith.subf %26, %27 : vector<2x256xf32>
    %cst_9 = arith.constant -5.000000e-01 : f32
    %29 = vector.broadcast %cst_9 : f32 to vector<2x256xf32>
    %30 = arith.mulf %29, %6 : vector<2x256xf32>
    %cst_10 = arith.constant 7.500000e-01 : f32
    %31 = vector.broadcast %cst_10 : f32 to vector<2x256xf32>
    %32 = arith.addf %31, %30 : vector<2x256xf32>
    %33 = arith.mulf %28, %28 : vector<2x256xf32>
    %34 = arith.mulf %32, %33 : vector<2x256xf32>
    %cst_11 = arith.constant 0.000000e+00 : f32
    %35 = vector.broadcast %cst_11 : f32 to vector<2x256xf32>
    %36 = arith.cmpf ogt, %6, %35 : vector<2x256xf32>
    %37 = arith.mulf %24, %34 : vector<2x256xf32>
    %cst_12 = arith.constant 0.000000e+00 : f32
    %38 = vector.broadcast %cst_12 : f32 to vector<2x256xf32>
    %39 = arith.select %36, %37, %38 : vector<2x256xi1>, vector<2x256xf32>
    %cst_13 = arith.constant 1.000000e+00 : f32
    %cst_14 = arith.constant 0.000000e+00 : f32
    %40 = vector.broadcast %cst_13 : f32 to vector<2x256xf32>
    %41 = vector.broadcast %cst_14 : f32 to vector<2x256xf32>
    %42 = arith.select %36, %40, %41 : vector<2x256xi1>, vector<2x256xf32>
    %c0_15 = arith.constant 0 : index
    %c0_16 = arith.constant 0 : index
    %43 = vector.load %arg4[%c0_15, %c0_16] : memref<2x256xf32, #tpu.memory_space<vmem>>, vector<2x256xf32>
    %44 = vector.shape_cast %39 : vector<2x256xf32> to vector<1x2x256xf32>
    %cst_17 = arith.constant dense<0.000000e+00> : vector<2x256xf32>
    %45 = vector.multi_reduction <add>, %44, %cst_17 [0] : vector<1x2x256xf32> to vector<2x256xf32>
    %46 = arith.addf %43, %45 : vector<2x256xf32>
    %c0_18 = arith.constant 0 : index
    %c0_19 = arith.constant 0 : index
    %47 = vector.load %arg4[%c0_18, %c0_19] : memref<2x256xf32, #tpu.memory_space<vmem>>, vector<2x256xf32>
    tpu.vector_store %arg4[%c0_18, %c0_19], %46 {strides = array<i32>} : memref<2x256xf32, #tpu.memory_space<vmem>>, vector<2x256xf32>,
    %c0_20 = arith.constant 0 : index
    %c0_21 = arith.constant 0 : index
    %48 = vector.load %arg5[%c0_20, %c0_21] : memref<2x256xf32, #tpu.memory_space<vmem>>, vector<2x256xf32>
    %49 = vector.shape_cast %42 : vector<2x256xf32> to vector<1x2x256xf32>
    %cst_22 = arith.constant dense<0.000000e+00> : vector<2x256xf32>
    %50 = vector.multi_reduction <add>, %49, %cst_22 [0] : vector<1x2x256xf32> to vector<2x256xf32>
    %51 = arith.addf %48, %50 : vector<2x256xf32>
    %c0_23 = arith.constant 0 : index
    %c0_24 = arith.constant 0 : index
    %52 = vector.load %arg5[%c0_23, %c0_24] : memref<2x256xf32, #tpu.memory_space<vmem>>, vector<2x256xf32>
    tpu.vector_store %arg5[%c0_23, %c0_24], %51 {strides = array<i32>} : memref<2x256xf32, #tpu.memory_space<vmem>>, vector<2x256xf32>,
    return
  }
  func.func @transform_0(%arg0: i32, %arg1: i32) -> (i32, i32) {
    %c0_i32 = arith.constant 0 : i32
    return %arg0, %arg1 : i32, i32
  }
  func.func @transform_1(%arg0: i32, %arg1: i32) -> (i32, i32) {
    %c0_i32 = arith.constant 0 : i32
    return %arg0, %arg1 : i32, i32
  }
  func.func @transform_2(%arg0: i32, %arg1: i32) -> (i32, i32) {
    %c0_i32 = arith.constant 0 : i32
    %c0_i32_0 = arith.constant 0 : i32
    %c0_i32_1 = arith.constant 0 : i32
    return %c0_i32, %c0_i32_0 : i32, i32
  }
  func.func @transform_3(%arg0: i32, %arg1: i32) -> (i32, i32) {
    %c0_i32 = arith.constant 0 : i32
    %c0_i32_0 = arith.constant 0 : i32
    %c0_i32_1 = arith.constant 0 : i32
    return %c0_i32, %c0_i32_0 : i32, i32
  }
}

</mosaic_0001>

<llo_original>
// kernel: tpu_custom_call.1
$region0: #{tpu_custom_call.1}
  #allocation0 [shape = 'u32[]', space=smem, size = 0x4, offset = 0x4, fixed_abs, tag = 'smem constant byte address 0x4 - core index']
  #allocation1 [shape = 'u32[144,128]{1,0:T(1,128)}', space=vmem, size = 0x12000, scoped, tag = 'internal scratch']
  %s0 = inlined_call_operand.hbm [shape: f32[2,256], index: 0, kind: input, shape index: {}]
  %s1 = inlined_call_operand.hbm [shape: f32[2,256], index: 1, kind: input, shape index: {}]
  %s2 = inlined_call_operand.hbm [shape: f32[2,256], index: 2, kind: output, shape index: {0}]
  %s3 = inlined_call_operand.hbm [shape: f32[2,256], index: 3, kind: output, shape index: {1}]
  %4 = xla_tuple %s2, %s3
  %s5 = sld [smem:[#allocation0]]
  $region38: #{tpu_custom_call.1} parent=0
    _
  %s7 = ssub.s32 1, %s5
  %s8 = scalar_select 0, %s7, %s5
  $region1: #{tpu_custom_call.1} parent=0
    #allocation2 [shape = 'u8[2048]{0}', space=vmem, size = 0x800, scoped, tag = 'input window, operand 0, single buffered']
    #allocation3 [shape = 's32[1]{0}', space=sflag, size = 0x4, scoped, tag = 'scoped memory for tpu_custom_call.1']
    #allocation4 [shape = 's32[1]{0}', space=sflag, size = 0x4, scoped, tag = 'scoped memory for tpu_custom_call.1']
    #allocation5 [shape = 'u8[2048]{0}', space=vmem, size = 0x800, scoped, tag = 'input window, operand 1, single buffered']
    #allocation6 [shape = 's32[1]{0}', space=sflag, size = 0x4, scoped, tag = 'scoped memory for tpu_custom_call.1']
    #allocation7 [shape = 'u8[2048]{0}', space=vmem, size = 0x800, scoped, tag = 'output window, operand 0, single buffered']
    #allocation8 [shape = 'u8[2048]{0}', space=vmem, size = 0x800, scoped, tag = 'output window, operand 1, single buffered']
    #allocation9 [shape = 's32[1]{0}', space=sflag, size = 0x4, scoped, tag = 'scoped memory for tpu_custom_call.1']
    %9 = vsyncpa [#allocation3], 0
    %10 = vsyncpa [#allocation6], 0
    %11 = vsyncpa [#allocation4], 0
    %12 = vsyncpa [#allocation9], 0
    // Predicated region
    $region2: #{tpu_custom_call.1} parent=1 // pred_check
      _
    $region3: #{tpu_custom_call.1} parent=1 // pred_check_branch
      %14 = sbr.rel (0) target = $region5
    $region4: #{tpu_custom_call.1} parent=1 // pred_region
      %s16 = ssub.s32 64, 64
      %17 = vsyncadd [#allocation3], %s16
      %s19 = sshll.u32 [#allocation2], 4
      %s20 = int_to_ptr.vmem [resolvable:$true] %s19
      %22 = dma.hbm_to_vmem [thread:$0]  %s0, 64, %s20, [#allocation3]
    $region5: #{tpu_custom_call.1} parent=1 // pred_fallthru
      _
    // Predicated region
    $region6: #{tpu_custom_call.1} parent=1 // pred_check
      _
    $region7: #{tpu_custom_call.1} parent=1 // pred_check_branch
      %24 = sbr.rel (0) target = $region9
    $region8: #{tpu_custom_call.1} parent=1 // pred_region
      %s26 = ssub.s32 64, 64
      %27 = vsyncadd [#allocation6], %s26
      %s29 = sshll.u32 [#allocation5], 4
      %s30 = int_to_ptr.vmem [resolvable:$true] %s29
      %32 = dma.hbm_to_vmem [thread:$0]  %s1, 64, %s30, [#allocation6]
    $region9: #{tpu_custom_call.1} parent=1 // pred_fallthru
      _
    // Predicated region
    $region10: #{tpu_custom_call.1} parent=1 // pred_check
      _
    $region11: #{tpu_custom_call.1} parent=1 // pred_check_branch
      %34 = sbr.rel (0) target = $region13
    $region12: #{tpu_custom_call.1} parent=1 // pred_region
      %35 = dma.done [#allocation3], 64
    $region13: #{tpu_custom_call.1} parent=1 // pred_fallthru
      _
    // Predicated region
    $region14: #{tpu_custom_call.1} parent=1 // pred_check
      _
    $region15: #{tpu_custom_call.1} parent=1 // pred_check_branch
      %37 = sbr.rel (0) target = $region17
    $region16: #{tpu_custom_call.1} parent=1 // pred_region
      %38 = dma.done [#allocation6], 64
    $region17: #{tpu_custom_call.1} parent=1 // pred_fallthru
      _
    %p39 = scmp.eq.s32.totalorder 0, 0
    %p40 = scmp.eq.s32.totalorder 0, 0
    %p41 = pnand %p39, %p40
    %p42 = pneg %p41
    // Predicated region
    $region18: #{tpu_custom_call.1} parent=1 // pred_check
      _
    $region19: #{tpu_custom_call.1} parent=1 // pred_check_branch
      %44 = sbr.rel (%p41) target = $region21
    $region20: #{tpu_custom_call.1} parent=1 // pred_region
      %45 = vst [vmem:[#allocation7] sm:$0xf] 0.0
      %46 = vst [vmem:[#allocation8] sm:$0xf] 0.0
    $region21: #{tpu_custom_call.1} parent=1 // pred_fallthru
      _
    %v47 = vld [vmem:[#allocation2] sm:$0xf]
    %v48 = vld [vmem:[#allocation5] sm:$0xf]
    %v49 = vand.u32 2147483647, %v47
    %v50 = vsub.f32 0.0, %v49
    %v51 = vmul.f32 %v50, 1.442695
    %v52 = vpow.pop %v51
    %v53 = vadd.f32 %v52, 1.0
    %v54 = vrcp.pop %v53
    %v55 = vmul.f32 1.0, %v54
    %vm56 = vcmp.ge.f32.partialorder %v47, 0.0
    %v57 = vmul.f32 %v52, %v55
    %v58 = vsel %vm56, %v55, %v57
    %v59 = vmax.f32 %v47, 0.0
    %v60 = vmul.f32 %v47, %v48
    %v61 = vsub.f32 %v59, %v60
    %v62 = vadd.f32 %v52, 1.0
    %v63 = vlog2.pop %v62
    %v64 = vmul.f32 %v63, 0.6931472
    %v65 = vmul.f32 -0.5, %v52
    %v66 = vadd.f32 %v65, 1.0
    %v67 = vmul.f32 %v66, %v52
    %v68 = vand.u32 2147483647, %v52
    %vm69 = vcmp.lt.f32.partialorder %v68, 0.0004427343
    %v70 = vsel %vm69, %v67, %v64
    %v71 = vadd.f32 %v61, %v70
    %v72 = vmul.f32 %v58, %v48
    %v73 = vadd.f32 %v58, %v48
    %v74 = vadd.f32 %v72, %v72
    %v75 = vsub.f32 %v73, %v74
    %v76 = vmul.f32 %v48, -0.5
    %v77 = vadd.f32 %v76, 0.75
    %v78 = vmul.f32 %v75, %v75
    %v79 = vmul.f32 %v77, %v78
    %vm80 = vcmp.gt.f32.partialorder %v48, 0.0
    %v81 = vmul.f32 %v71, %v79
    %v82 = vsel %vm80, %v81, 0.0
    %v83 = vsel %vm80, 1.0, 0.0
    %v84 = vld [vmem:[#allocation7] sm:$0xf]
    %v85 = vadd.f32 %v82, 0.0
    %v86 = vadd.f32 %v84, %v85
    %87 = vst [vmem:[#allocation7] sm:$0xf] %v86
    %v88 = vld [vmem:[#allocation8] sm:$0xf]
    %v89 = vadd.f32 %v83, 0.0
    %v90 = vadd.f32 %v88, %v89
    %91 = vst [vmem:[#allocation8] sm:$0xf] %v90
    // Predicated region
    $region22: #{tpu_custom_call.1} parent=1 // pred_check
      _
    $region23: #{tpu_custom_call.1} parent=1 // pred_check_branch
      %93 = sbr.rel (0) target = $region25
    $region24: #{tpu_custom_call.1} parent=1 // pred_region
      %s95 = ssub.s32 64, 64
      %96 = vsyncadd [#allocation4], %s95
      %s98 = sshll.u32 [#allocation7], 4
      %s99 = int_to_ptr.vmem [resolvable:$true] %s98
      %101 = dma.vmem_to_hbm [thread:$0]  %s99, 64, %s2, [#allocation4]
    $region25: #{tpu_custom_call.1} parent=1 // pred_fallthru
      _
    // Predicated region
    $region26: #{tpu_custom_call.1} parent=1 // pred_check
      _
    $region27: #{tpu_custom_call.1} parent=1 // pred_check_branch
      %103 = sbr.rel (0) target = $region29
    $region28: #{tpu_custom_call.1} parent=1 // pred_region
      %s105 = ssub.s32 64, 64
      %106 = vsyncadd [#allocation9], %s105
      %s108 = sshll.u32 [#allocation8], 4
      %s109 = int_to_ptr.vmem [resolvable:$true] %s108
      %111 = dma.vmem_to_hbm [thread:$0]  %s109, 64, %s3, [#allocation9]
    $region29: #{tpu_custom_call.1} parent=1 // pred_fallthru
      _
    // Predicated region
    $region30: #{tpu_custom_call.1} parent=1 // pred_check
      _
    $region31: #{tpu_custom_call.1} parent=1 // pred_check_branch
      %113 = sbr.rel (0) target = $region33
    $region32: #{tpu_custom_call.1} parent=1 // pred_region
      %114 = dma.done [#allocation4], 64
    $region33: #{tpu_custom_call.1} parent=1 // pred_fallthru
      _
    // Predicated region
    $region34: #{tpu_custom_call.1} parent=1 // pred_check
      _
    $region35: #{tpu_custom_call.1} parent=1 // pred_check_branch
      %116 = sbr.rel (0) target = $region37
    $region36: #{tpu_custom_call.1} parent=1 // pred_region
      %117 = dma.done [#allocation9], 64
    $region37: #{tpu_custom_call.1} parent=1 // pred_fallthru
      _
    %118 = vsyncpa [#allocation3], 1
    %119 = vsyncpa [#allocation6], 1
    %120 = vsyncpa [#allocation4], 1
    %121 = vsyncpa [#allocation9], 1

</llo_original>
